<compile_context>
chip_gen: v7x
topology: tpu7x:2x2x1
jax: 0.10.0
libtpu: 0.0.40
codegen_flags: <defaults>
</compile_context>

<pallas_src>
import math
from functools import partial

import jax
import jax.numpy as jnp
from jax.experimental import pallas as pl
from jax.experimental.pallas import tpu as pltpu


# ----------------------------------------------------------------------------
# Fused Pallas kernel: GAP over H*W  ->  band Conv1d (as band-matrix matmul)
#                      ->  sigmoid  ->  x * attn,   all for one batch element.
# ----------------------------------------------------------------------------
def _eca_fused_kernel(x_ref, wb_ref, o_ref, *, inv_hw):
    # x_ref : (1, bands, HWp)  activation slab (spatial on lanes, zero-padded)
    # wb_ref: (bands, bands)   folded Conv1d band matrix
    # o_ref : (1, bands, HWp)
    x = x_ref[0].astype(jnp.float32)                          # (bands, HWp)

    # Global average pool over H*W. Padded lanes are zero, so a plain sum
    # divided by the *true* H*W is exact.
    gap = jnp.sum(x, axis=1, keepdims=True) * inv_hw          # (bands, 1)

    # 1-D cross-correlation across bands == banded matmul (weights folded in
    # the wrapper, so no cross-sublane shifting is needed here).
    logits = jnp.dot(wb_ref[...], gap,
                     preferred_element_type=jnp.float32)      # (bands, 1)
    attn = jax.nn.sigmoid(logits)                             # (bands, 1)

    # Scale every spatial element of each band by its attention weight.
    o_ref[0] = (x * attn).astype(o_ref.dtype)


# ----------------------------------------------------------------------------
# Wrapper
# ----------------------------------------------------------------------------
def eca_spectral_attention_3d(x, w1d):
    """ECA_SpectralAttention_3d.forward.

    x   : (B, 1, bands, H, W)   NCDHW input with C == 1 (as the module requires)
    w1d : (k,)                  Conv1d(1, 1, k, padding=(k-1)//2, bias=False) weight
    returns (B, 1, bands, H, W)
    """
    B, C, bands, H, W = x.shape
    assert C == 1, "ECA_SpectralAttention_3d requires a single input channel"
    # TODO(synk): AdaptiveAvgPool3d((bands,1,1)) with input depth != bands would
    # resample the depth axis; the module is only ever used with depth == bands.

    HW = H * W
    HWp = ((HW + 127) // 128) * 128          # lane-dense slab (multiple of 128)

    xf = x.reshape(B, bands, HW)
    if HWp != HW:                            # pad only when actually needed
        xf = jnp.pad(xf, ((0, 0), (0, 0), (0, HWp - HW)))

    # Fold the tiny Conv1d (cross-correlation, zero padding p=(k-1)//2) into a
    # (bands, bands) band matrix:  wb[d, s] = w[s - d + p] if valid else 0.
    k = int(w1d.shape[0])
    p = (k - 1) // 2
    d = jnp.arange(bands)
    tap = d[None, :] - d[:, None] + p
    wb = jnp.where((tap >= 0) & (tap < k),
                   w1d[jnp.clip(tap, 0, k - 1)], 0.0).astype(jnp.float32)

    out = pl.pallas_call(
        partial(_eca_fused_kernel, inv_hw=1.0 / HW),
        out_shape=jax.ShapeDtypeStruct((B, bands, HWp), x.dtype),
        grid=(B,),
        in_specs=[
            pl.BlockSpec((1, bands, HWp), lambda b: (b, 0, 0)),
            pl.BlockSpec((bands, bands), lambda b: (0, 0)),
        ],
        out_specs=pl.BlockSpec((1, bands, HWp), lambda b: (b, 0, 0)),
        compiler_params=pltpu.CompilerParams(
            dimension_semantics=("parallel",)),
    )(xf, wb)

    if HWp != HW:
        out = out[:, :, :HW]
    return out.reshape(B, 1, bands, H, W)


# ----------------------------------------------------------------------------
# Pure-JAX reference (mirrors the PyTorch forward) for correctness checking.
# ----------------------------------------------------------------------------
def _eca_reference(x, w1d):
    B, C, bands, H, W = x.shape
    gap = jnp.mean(x, axis=(3, 4))                       # (B, 1, bands)
    k = w1d.shape[0]
    p = (k - 1) // 2
    gp = jnp.pad(gap, ((0, 0), (0, 0), (p, p)))
    logits = sum(w1d[j] * gp[:, :, j:j + bands] for j in range(k))
    attn = jax.nn.sigmoid(logits).reshape(B, 1, bands, 1, 1)
    return x * attn


# ----------------------------------------------------------------------------
if __name__ == "__main__":
    B, bands, H, W = 2, 16, 16, 16                        # small demo shapes

    key = jax.random.PRNGKey(0)
    kx, kw = jax.random.split(key)
    x = jax.random.normal(kx, (B, 1, bands, H, W), jnp.float32)   # NCDHW, C=1

    # Conv1d kernel size from the module __init__ (gamma=2, b=1), forced odd.
    ksz = int(abs((math.log(bands, 2) + 1) / 2))
    if ksz % 2 == 0:
        ksz += 1
    w1d = jax.random.normal(kw, (ksz,), jnp.float32) / math.sqrt(ksz)

    out = jax.jit(eca_spectral_attention_3d)(x, w1d)
    out = jax.block_until_ready(out)

    ref = _eca_reference(x, w1d)
    assert out.shape == (B, 1, bands, H, W), out.shape
    assert bool(jnp.all(jnp.isfinite(out)))
    assert bool(jnp.allclose(out, ref, atol=1e-5, rtol=1e-5))
    print("KERNEL_OK")
</pallas_src>

<mosaic_0001>
module attributes {stable_mosaic.version = 11 : i64} {
  func.func @_eca_fused_kernel(%arg0: i32, %arg1: memref<1x16x256xf32, #tpu.memory_space<vmem>>, %arg2: memref<16x16xf32, #tpu.memory_space<vmem>>, %arg3: memref<1x16x256xf32, #tpu.memory_space<vmem>>) attributes {dimension_semantics = [#tpu.dimension_semantics<parallel>], iteration_bounds = array<i64: 2>, scalar_prefetch = 0 : i64, scratch_operands = 0 : i64, tpu.core_type = #tpu.core_type<tc>, window_params = [{transform_indices = @transform_0, window_bounds = array<i64: 1, 16, 256>}, {pipeline_mode = #tpu.pipeline_mode<synchronous>, transform_indices = @transform_1, window_bounds = array<i64: 16, 16>}, {transform_indices = @transform_2, window_bounds = array<i64: 1, 16, 256>}]} {
    %c0 = arith.constant 0 : index
    %c0_0 = arith.constant 0 : index
    %c0_1 = arith.constant 0 : index
    %0 = vector.load %arg1[%c0, %c0_0, %c0_1] : memref<1x16x256xf32, #tpu.memory_space<vmem>>, vector<1x16x256xf32>
    %1 = vector.shape_cast %0 : vector<1x16x256xf32> to vector<16x256xf32>
    %cst = arith.constant dense<0.000000e+00> : vector<16xf32>
    %2 = vector.multi_reduction <add>, %1, %cst [1] : vector<16x256xf32> to vector<16xf32>
    %3 = vector.shape_cast %2 : vector<16xf32> to vector<16x1xf32>
    %cst_2 = arith.constant 3.906250e-03 : f32
    %4 = vector.broadcast %cst_2 : f32 to vector<16x1xf32>
    %5 = arith.mulf %3, %4 : vector<16x1xf32>
    %c0_3 = arith.constant 0 : index
    %c0_4 = arith.constant 0 : index
    %6 = vector.load %arg2[%c0_3, %c0_4] : memref<16x16xf32, #tpu.memory_space<vmem>>, vector<16x16xf32>
    %cst_5 = arith.constant dense<0.000000e+00> : vector<16x1xf32>
    %7 = tpu.matmul %6, %5, %cst_5 {dimension_numbers = #tpu.dot_dimension_numbers<[1], [0], [0], [1], [0, 0, 1, 1], [], []>} : vector<16x16xf32>, vector<16x1xf32>, vector<16x1xf32> -> vector<16x1xf32>
    %8 = arith.negf %7 : vector<16x1xf32>
    %9 = math.exp %8 : vector<16x1xf32>
    %cst_6 = arith.constant 1.000000e+00 : f32
    %10 = vector.broadcast %cst_6 : f32 to vector<16x1xf32>
    %11 = arith.addf %10, %9 : vector<16x1xf32>
    %12 = arith.divf %10, %11 : vector<16x1xf32>
    %13 = vector.broadcast %12 : vector<16x1xf32> to vector<16x256xf32>
    %14 = arith.mulf %1, %13 : vector<16x256xf32>
    %c0_7 = arith.constant 0 : index
    %c0_8 = arith.constant 0 : index
    %c0_9 = arith.constant 0 : index
    %15 = vector.load %arg3[%c0_7, %c0_8, %c0_9] : memref<1x16x256xf32, #tpu.memory_space<vmem>>, vector<1x16x256xf32>
    %16 = vector.shape_cast %15 : vector<1x16x256xf32> to vector<16x256xf32>
    %17 = vector.shape_cast %14 : vector<16x256xf32> to vector<1x16x256xf32>
    tpu.vector_store %arg3[%c0_7, %c0_8, %c0_9], %17 {strides = array<i32>} : memref<1x16x256xf32, #tpu.memory_space<vmem>>, vector<1x16x256xf32>,
    return
  }
  func.func @transform_0(%arg0: i32) -> (i32, i32, i32) {
    %c0_i32 = arith.constant 0 : i32
    %c0_i32_0 = arith.constant 0 : i32
    %c0_i32_1 = arith.constant 0 : i32
    return %arg0, %c0_i32, %c0_i32_0 : i32, i32, i32
  }
  func.func @transform_1(%arg0: i32) -> (i32, i32) {
    %c0_i32 = arith.constant 0 : i32
    %c0_i32_0 = arith.constant 0 : i32
    %c0_i32_1 = arith.constant 0 : i32
    return %c0_i32, %c0_i32_0 : i32, i32
  }
  func.func @transform_2(%arg0: i32) -> (i32, i32, i32) {
    %c0_i32 = arith.constant 0 : i32
    %c0_i32_0 = arith.constant 0 : i32
    %c0_i32_1 = arith.constant 0 : i32
    return %arg0, %c0_i32, %c0_i32_0 : i32, i32, i32
  }
}

</mosaic_0001>

<llo_original>
// kernel: eca_spectral_attention_3d.1
$region0: #{eca_spectral_attention_3d.1}
  #allocation0 [shape = 'u32[]', space=smem, size = 0x4, offset = 0x4, fixed_abs, tag = 'smem constant byte address 0x4 - core index']
  #allocation1 [shape = 'u32[144,128]{1,0:T(1,128)}', space=vmem, size = 0x12000, scoped, tag = 'internal scratch']
  %s0 = inlined_call_operand.vmem [shape: f32[2,16,256], index: 0, kind: input, shape index: {}]
  %s1 = inlined_call_operand.vmem [shape: f32[16,16], index: 1, kind: input, shape index: {}]
  %s2 = inlined_call_operand.vmem [shape: f32[2,16,256], index: 2, kind: output, shape index: {}]
  %s3 = sld [smem:[#allocation0]]
  $region41: #{eca_spectral_attention_3d.1} parent=0
    _
  %s5 = ssub.s32 1, %s3
  %s6 = scalar_select 0, %s5, %s3
  loop: start=0, step=1, limit=4
  $region2: #{eca_spectral_attention_3d.1} parent=0 // loop_pre_header
    _
  $region3: #{eca_spectral_attention_3d.1} parent=0 // loop_header
    %s8 = sphi 0, %s12
    %p9 = scmp.ge.s32.totalorder %s8, 4
    %s18 = sphi 0, %s20
    %s21 = sphi 0, %s18
    %s22 = sphi 0, %s21
    %s38 = sphi 0, %s22
    %s42 = sphi 0, %s42
    %s44 = sphi 0, %s42
    %s45 = sphi 0, %s44
    %s59 = sphi 0, %s45
    %s65 = sphi 0, %s67
    %s68 = sphi 0, %s65
    %s69 = sphi 0, %s68
    %s85 = sphi 0, %s69
  $region4: #{eca_spectral_attention_3d.1} parent=0 // loop_header_branch
    %11 = sbr.rel (%p9) target = $region8
  $region5: #{eca_spectral_attention_3d.1} parent=0 // loop_body
    %s13 = ssub.s32 %s8, 1
    %s14 = ssub.s32 %s8, 2
    %s15 = sadd.s32 %s8, 1
    %s16 = ssub.s32 %s8, %s15
    %p17 = scmp.eq.s32.totalorder %s16, 0
    %s19 = sadd.s32 %s18, 1
    %s20 = scalar_select %p17, %s18, %s19
    %p23 = pneg %p17
    %p24 = scmp.eq.s32.totalorder %s8, 1
    %p25 = por %p23, %p24
    %p26 = scmp.ne.s32.totalorder %s18, %s21
    %p27 = scmp.eq.s32.totalorder %s8, 0
    %p28 = por %p26, %p27
    %p29 = scmp.ne.s32.totalorder %s18, %s21
    %p30 = scmp.eq.s32.totalorder %s13, 1
    %p31 = por %p29, %p30
    %p32 = scmp.ne.s32.totalorder %s21, %s22
    %p33 = scmp.eq.s32.totalorder %s13, 0
    %p34 = por %p32, %p33
    %p35 = scmp.ne.s32.totalorder %s21, %s22
    %p36 = scmp.eq.s32.totalorder %s14, 1
    %p37 = por %p35, %p36
    %p39 = scmp.ne.s32.totalorder %s22, %s38
    %p40 = scmp.eq.s32.totalorder %s14, 0
    %p41 = por %p39, %p40
    %s43 = sadd.s32 %s42, 1
    %p46 = scmp.eq.s32.totalorder %s8, 1
    %p47 = scmp.ne.s32.totalorder %s42, %s44
    %p48 = scmp.eq.s32.totalorder %s8, 0
    %p49 = por %p47, %p48
    %p50 = scmp.ne.s32.totalorder %s42, %s44
    %p51 = scmp.eq.s32.totalorder %s13, 1
    %p52 = por %p50, %p51
    %p53 = scmp.ne.s32.totalorder %s44, %s45
    %p54 = scmp.eq.s32.totalorder %s13, 0
    %p55 = por %p53, %p54
    %p56 = scmp.ne.s32.totalorder %s44, %s45
    %p57 = scmp.eq.s32.totalorder %s14, 1
    %p58 = por %p56, %p57
    %p60 = scmp.ne.s32.totalorder %s45, %s59
    %p61 = scmp.eq.s32.totalorder %s14, 0
    %p62 = por %p60, %p61
    %s63 = ssub.s32 %s8, %s15
    %p64 = scmp.eq.s32.totalorder %s63, 0
    %s66 = sadd.s32 %s65, 1
    %s67 = scalar_select %p64, %s65, %s66
    %p70 = pneg %p64
    %p71 = scmp.eq.s32.totalorder %s8, 1
    %p72 = por %p70, %p71
    %p73 = scmp.ne.s32.totalorder %s65, %s68
    %p74 = scmp.eq.s32.totalorder %s8, 0
    %p75 = por %p73, %p74
    %p76 = scmp.ne.s32.totalorder %s65, %s68
    %p77 = scmp.eq.s32.totalorder %s13, 1
    %p78 = por %p76, %p77
    %p79 = scmp.ne.s32.totalorder %s68, %s69
    %p80 = scmp.eq.s32.totalorder %s13, 0
    %p81 = por %p79, %p80
    %p82 = scmp.ne.s32.totalorder %s68, %s69
    %p83 = scmp.eq.s32.totalorder %s14, 1
    %p84 = por %p82, %p83
    %p86 = scmp.ne.s32.totalorder %s69, %s85
    %p87 = scmp.eq.s32.totalorder %s14, 0
    %p88 = por %p86, %p87
    %p89 = scmp.le.s32.totalorder 1, %s8
    %p90 = scmp.lt.s32.totalorder %s8, 3
    %p91 = pnand %p89, %p90
    %p92 = pneg %p91
    // Predicated region
    $region9: #{eca_spectral_attention_3d.1} parent=5 // pred_check
      _
    $region10: #{eca_spectral_attention_3d.1} parent=5 // pred_check_branch
      %94 = sbr.rel (%p91) target = $region12
    $region11: #{eca_spectral_attention_3d.1} parent=5 // pred_region
      %s95 = ssub.s32 %s8, 1
      // Predicated region
      $region13: #{eca_spectral_attention_3d.1} parent=11 // pred_check
        %p96 = pneg %p55
      $region14: #{eca_spectral_attention_3d.1} parent=11 // pred_check_branch
        %98 = sbr.rel (%p96) target = $region16
      $region15: #{eca_spectral_attention_3d.1} parent=11 // pred_region
        _
      $region16: #{eca_spectral_attention_3d.1} parent=11 // pred_fallthru
        _
    $region12: #{eca_spectral_attention_3d.1} parent=5 // pred_fallthru
      _
    %p99 = scmp.lt.s32.totalorder %s8, 2
    // Predicated region
    $region17: #{eca_spectral_attention_3d.1} parent=5 // pred_check
      %p100 = pneg %p99
    $region18: #{eca_spectral_attention_3d.1} parent=5 // pred_check_branch
      %102 = sbr.rel (%p100) target = $region20
    $region19: #{eca_spectral_attention_3d.1} parent=5 // pred_region
      // Predicated region
      $region21: #{eca_spectral_attention_3d.1} parent=19 // pred_check
        %p103 = pneg %p28
      $region22: #{eca_spectral_attention_3d.1} parent=19 // pred_check_branch
        %105 = sbr.rel (%p103) target = $region24
      $region23: #{eca_spectral_attention_3d.1} parent=19 // pred_region
        %p106 = scmp.lt.s32.totalorder %s8, 1
        %s107 = scalar_select %p106, %s8, 1
        %s108 = smul.addr %s107, 4
        %s109 = smul.addr %s108, 8
        %s110 = scalar_lea.vmem %s0, %s109
      $region24: #{eca_spectral_attention_3d.1} parent=19 // pred_fallthru
        _
    $region20: #{eca_spectral_attention_3d.1} parent=5 // pred_fallthru
      _
    %p111 = scmp.le.s32.totalorder 1, %s8
    %p112 = scmp.lt.s32.totalorder %s8, 3
    %p113 = pnand %p111, %p112
    %p114 = pneg %p113
    // Predicated region
    $region25: #{eca_spectral_attention_3d.1} parent=5 // pred_check
      _
    $region26: #{eca_spectral_attention_3d.1} parent=5 // pred_check_branch
      %116 = sbr.rel (%p113) target = $region28
    $region27: #{eca_spectral_attention_3d.1} parent=5 // pred_region
      %s117 = ssub.s32 %s8, 1
      %p118 = scmp.lt.s32.totalorder %s13, 1
      %s119 = scalar_select %p118, %s13, 1
      %s120 = smul.addr %s119, 4
      %s121 = smul.addr %s120, 8
      %s122 = scalar_lea.vmem %s0, %s121
      %p123 = pneg %p34
      %p124 = pneg %p31
      %p125 = pneg %p55
      %p126 = pneg %p52
      %p127 = pneg %p81
      %p128 = pneg %p78
      %p129 = scmp.lt.s32.totalorder %s13, 1
      %s130 = scalar_select %p129, %s13, 1
      %s131 = smul.addr %s130, 4
      %s132 = smul.addr %s131, 8
      %s133 = scalar_lea.vmem %s2, %s132
      %p134 = scmp.lt.s32.totalorder %s13, 1
      %s135 = scalar_select %p134, %s13, 1
      %s136 = smul.addr %s135, 4
      %s137 = smul.addr %s136, 8
      %s138 = scalar_lea.vmem %s0, %s137
      %p139 = scmp.lt.s32.totalorder %s13, 1
      %s140 = scalar_select %p139, %s13, 1
      %s141 = smul.addr %s140, 4
      %s142 = smul.addr %s141, 8
      %s143 = scalar_lea.vmem %s2, %s142
      %v144 = vld [vmem:[%s138] sm:$0xff]
      %v145 = vld [vmem:[%s138 + $0x8] sm:$0xff]
      %v146 = vld [vmem:[%s138 + $0x10] sm:$0xff]
      %v147 = vld [vmem:[%s138 + $0x18] sm:$0xff]
      %v148 = vadd.f32 %v144, %v145
      %149 = vadd.xlane.f32.xlu0 %v148
      %v150 = vpop.xlane.xlu0 %149
      %v151 = vadd.f32 %v146, %v147
      %152 = vadd.xlane.f32.xlu0 %v151
      %v153 = vpop.xlane.xlu0 %152
      %v154 = vmul.f32 %v150, 0.00390625
      %v155 = vmul.f32 %v153, 0.00390625
      %v156 = vld [vmem:[%s1] sm:$0xff]
      %v157 = vld [vmem:[%s1 + $0x8] sm:$0xff]
      %vm158 = vcmask 130048
      %v160 = vsel %vm158, %v156, 0
      %v163 = vsel %vm158, %v157, 0
      %165 = vmatprep.subr.mxu0 0.0
      %166 = vmatpush1.msra.mxu0 %v154
      %167 = vmatprep.subr.mxu0 0.0
      %168 = vmatpush1.msra.mxu0 %v155
      %169 = vmatprep.subr.mxu0 0.0
      %170 = vmatpush1.msra.mxu0 0.0
      %171 = vmatprep.subr.mxu0 0.0
      %172 = vmatpush1.msra.mxu0 0.0
      %173 = vmatprep.subr.mxu0 0.0
      %174 = vmatpush1.msra.mxu0 0.0
      %175 = vmatprep.subr.mxu0 0.0
      %176 = vmatpush1.msra.mxu0 0.0
      %177 = vmatprep.subr.mxu0 0.0
      %178 = vmatpush1.msra.mxu0 0.0
      %179 = vmatprep.subr.mxu0 0.0
      %180 = vmatpush1.msra.mxu0 0.0
      %181 = vmatprep.subr.mxu0 0.0
      %182 = vmatpush1.msra.mxu0 0.0
      %183 = vmatprep.subr.mxu0 0.0
      %184 = vmatpush1.msra.mxu0 0.0
      %185 = vmatprep.subr.mxu0 0.0
      %186 = vmatpush1.msra.mxu0 0.0
      %187 = vmatprep.subr.mxu0 0.0
      %188 = vmatpush1.msra.mxu0 0.0
      %189 = vmatprep.subr.mxu0 0.0
      %190 = vmatpush1.msra.mxu0 0.0
      %191 = vmatprep.subr.mxu0 0.0
      %192 = vmatpush1.msra.mxu0 0.0
      %193 = vmatprep.subr.mxu0 0.0
      %194 = vmatpush1.msra.mxu0 0.0
      %195 = vmatprep.subr.mxu0 0.0
      %196 = vmatpush1.msra.mxu0 0.0
      %197 = vmatprep.subr.mxu0 0.0
      %198 = vmatpush1.msra.mxu0 0.0
      %199 = vmatprep.subr.mxu0 0.0
      %200 = vmatpush1.msra.mxu0 0.0
      %201 = vmatprep.subr.mxu0 0.0
      %202 = vmatpush1.msra.mxu0 0.0
      %203 = vmatprep.subr.mxu0 0.0
      %204 = vmatpush1.msra.mxu0 0.0
      %205 = vmatprep.subr.mxu0 0.0
      %206 = vmatpush1.msra.mxu0 0.0
      %207 = vmatprep.subr.mxu0 0.0
      %208 = vmatpush1.msra.mxu0 0.0
      %209 = vmatprep.subr.mxu0 0.0
      %210 = vmatpush1.msra.mxu0 0.0
      %211 = vmatprep.subr.mxu0 0.0
      %212 = vmatpush1.msra.mxu0 0.0
      %213 = vmatprep.subr.mxu0 0.0
      %214 = vmatpush1.msra.mxu0 0.0
      %215 = vmatprep.subr.mxu0 0.0
      %216 = vmatpush1.msra.mxu0 0.0
      %217 = vmatprep.subr.mxu0 0.0
      %218 = vmatpush1.msra.mxu0 0.0
      %219 = vmatprep.subr.mxu0 0.0
      %220 = vmatpush1.msra.mxu0 0.0
      %221 = vmatprep.subr.mxu0 0.0
      %222 = vmatpush1.msra.mxu0 0.0
      %223 = vmatprep.subr.mxu0 0.0
      %224 = vmatpush1.msra.mxu0 0.0
      %225 = vmatprep.subr.mxu0 0.0
      %226 = vmatpush1.msra.mxu0 0.0
      %227 = vmatprep.subr.mxu0 0.0
      %228 = vmatpush1.msra.mxu0 0.0
      %229 = vmatprep.mubr.f32.mxu0 0.0
      %230 = vmatmul.mubr.f32.gmra.mrb[0].mxu0 %v160
      %v231 = vpop.f32.mrb[0].mxu0
      %v232 = vadd.f32 0.0, %v231
      %v233 = vpop.f32.mrb[0].mxu0
      %234 = vmatprep.mubr.f32.mxu0 0.0
      %235 = vmatmul.mubr.f32.gmra.mrb[0].mxu0 %v163
      %v236 = vpop.f32.mrb[0].mxu0
      %v237 = vadd.f32 0.0, %v236
      %v238 = vpop.f32.mrb[0].mxu0
      %239 = vdwg.mxu0
      %v240 = vxor.u32 %v232, 2147483648
      %v241 = vxor.u32 %v237, 2147483648
      %v242 = vmul.f32 %v240, 1.442695
      %v243 = vpow.pop %v242
      %v244 = vmul.f32 %v241, 1.442695
      %v245 = vpow.pop %v244
      %v246 = vadd.f32 %v243, 1.0
      %v247 = vadd.f32 %v245, 1.0
      %v248 = vrcp.pop %v246
      %v249 = vmul.f32 1.0, %v248
      %v250 = vrcp.pop %v247
      %v251 = vmul.f32 1.0, %v250
      %253 = vset.pattern.permute.xlu0 0
      %254 = vperm.xlu0 %253, %v249
      %v255 = vpop.permute.xlu0 %254
      %258 = vset.pattern.permute.xlu0 0
      %259 = vperm.xlu0 %258, %v251
      %v260 = vpop.permute.xlu0 %259
      %v262 = vmul.f32 %v144, %v255
      %v263 = vmul.f32 %v145, %v255
      %v264 = vmul.f32 %v146, %v260
      %v265 = vmul.f32 %v147, %v260
      %266 = vst [vmem:[%s143] sm:$0xff] %v262
      %267 = vst [vmem:[%s143 + $0x8] sm:$0xff] %v263
      %268 = vst [vmem:[%s143 + $0x10] sm:$0xff] %v264
      %269 = vst [vmem:[%s143 + $0x18] sm:$0xff] %v265
      %p270 = scmp.lt.s32.totalorder %s13, 1
      %s271 = scalar_select %p270, %s13, 1
      %s272 = smul.addr %s271, 4
      %s273 = smul.addr %s272, 8
      %s274 = scalar_lea.vmem %s2, %s273
      // Predicated region
      $region29: #{eca_spectral_attention_3d.1} parent=27 // pred_check
        %p275 = pneg %p78
      $region30: #{eca_spectral_attention_3d.1} parent=27 // pred_check_branch
        %277 = sbr.rel (%p275) target = $region32
      $region31: #{eca_spectral_attention_3d.1} parent=27 // pred_region
        _
      $region32: #{eca_spectral_attention_3d.1} parent=27 // pred_fallthru
        _
    $region28: #{eca_spectral_attention_3d.1} parent=5 // pred_fallthru
      _
    %p278 = scmp.le.s32.totalorder 2, %s8
    // Predicated region
    $region33: #{eca_spectral_attention_3d.1} parent=5 // pred_check
      %p279 = pneg %p278
    $region34: #{eca_spectral_attention_3d.1} parent=5 // pred_check_branch
      %281 = sbr.rel (%p279) target = $region36
    $region35: #{eca_spectral_attention_3d.1} parent=5 // pred_region
      %s282 = ssub.s32 %s8, 2
      // Predicated region
      $region37: #{eca_spectral_attention_3d.1} parent=35 // pred_check
        %p283 = pneg %p84
      $region38: #{eca_spectral_attention_3d.1} parent=35 // pred_check_branch
        %285 = sbr.rel (%p283) target = $region40
      $region39: #{eca_spectral_attention_3d.1} parent=35 // pred_region
        %p286 = scmp.lt.s32.totalorder %s14, 1
        %s287 = scalar_select %p286, %s14, 1
        %s288 = smul.addr %s287, 4
        %s289 = smul.addr %s288, 8
        %s290 = scalar_lea.vmem %s2, %s289
      $region40: #{eca_spectral_attention_3d.1} parent=35 // pred_fallthru
        _
    $region36: #{eca_spectral_attention_3d.1} parent=5 // pred_fallthru
      _
  $region6: #{eca_spectral_attention_3d.1} parent=0 // loop_footer
    %s12 = sadd.s32 1, %s8
  $region7: #{eca_spectral_attention_3d.1} parent=0 // loop_footer_branch
    %7 = sbr.rel target = $region3
  $region8: #{eca_spectral_attention_3d.1} parent=0 // loop_exit
    _

</llo_original>
